<compile_context>
chip_gen: v7x
topology: tpu7x:2x2x1
jax: 0.10.0
libtpu: 0.0.40
codegen_flags: <defaults>
</compile_context>

<pallas_src>
import jax
import jax.numpy as jnp
from jax.experimental import pallas as pl
from jax.experimental.pallas import tpu as pltpu

HIDDEN = 16
LANES = 128


def _vector_field_kernel(params_ref, y_ref, o_ref):
    # params layout (flat f32[49] in SMEM):
    #   [0:16)  w1[j]   (Linear(1,16) weight, hidden-major)
    #   [16:32) b1[j]   (Linear(1,16) bias)
    #   [32:48) w2[j]   (Linear(16,1) weight, hidden-major)
    #   [48]    b2      (Linear(16,1) bias)
    y = y_ref[...].astype(jnp.float32)  # (block_rows, LANES), lane-dense batch

    # Read all 49 scalars once, before the unrolled loop (cheap SMEM reads,
    # arriving as sreg operands to the VALU ops rather than per-iter splats).
    w1 = [params_ref[j] for j in range(HIDDEN)]
    b1 = [params_ref[HIDDEN + j] for j in range(HIDDEN)]
    w2 = [params_ref[2 * HIDDEN + j] for j in range(HIDDEN)]
    b2 = params_ref[3 * HIDDEN]

    # Fold the output bias into the accumulator init (saves one whole-tile add).
    acc = jnp.full_like(y, b2)
    # Static, fully-unrolled loop over the 16 hidden units: pure VPU mul/add +
    # EUP tanh on full tiles -- no MXU push/pop, no cross-lane traffic.
    for j in range(HIDDEN):
        acc = acc + jnp.tanh(y * w1[j] + b1[j]) * w2[j]
    o_ref[...] = acc.astype(o_ref.dtype)


def _choose_block_rows(rows, requested):
    """Pick a block height: multiple of 8 (or the full extent), large enough to
    amortize per-step overhead, small enough to keep >=2 grid steps for v7x's
    two TensorCores when the batch permits."""
    if rows <= 16:
        return rows  # single full-extent block (block dim == array dim is legal)
    # Cap so the grid has at least 2 steps; round the cap up to a sublane multiple.
    cap = ((-(-rows // 2)) + 7) // 8 * 8
    return max(8, min(requested, cap))


def vector_field(t, y, w1, b1, w2, b2, *, block_rows=512):
    """Pallas forward pass for VectorField. `t` is unused (matches PyTorch).

    y: (B, 1). Parameters are stored (in_features, out_features), i.e. already
    transposed vs. torch.nn.Linear: w1 (1,16), b1 (1,16), w2 (16,1), b2 (1,1).
    Returns (B, 1) in y's dtype.
    """
    del t  # VectorField.forward ignores t
    B = y.shape[0]
    out_dtype = y.dtype
    if B == 0:  # guard the empty-batch edge case
        return jnp.zeros((0, 1), dtype=out_dtype)

    # Pack all parameters into one flat f32 array -> single SMEM-resident operand.
    params = jnp.concatenate(
        [w1.reshape(-1), b1.reshape(-1), w2.reshape(-1), b2.reshape(-1)]
    ).astype(jnp.float32)  # (49,)

    # Lane-dense batch layout: (B, 1) -> flat (B,) -> pad ONLY to a multiple of
    # 128 lanes -> (rows, 128). The ragged last row-block (if any) is masked by
    # Pallas via grid = cdiv(rows, block_rows); padded lanes are sliced off below.
    n_pad = pl.cdiv(B, LANES) * LANES
    y_flat = y.reshape(-1).astype(jnp.float32)
    if n_pad != B:
        y_flat = jnp.pad(y_flat, (0, n_pad - B))
    rows = n_pad // LANES
    y2d = y_flat.reshape(rows, LANES)

    br = _choose_block_rows(rows, block_rows)
    grid = (pl.cdiv(rows, br),)

    out2d = pl.pallas_call(
        _vector_field_kernel,
        out_shape=jax.ShapeDtypeStruct((rows, LANES), out_dtype),
        grid=grid,
        in_specs=[
            # Packed params: whole array, kept in SMEM (no per-step tiling).
            pl.BlockSpec(memory_space=pltpu.MemorySpace.SMEM),
            # Batch tiles, lane-dense, large blocks.
            pl.BlockSpec((br, LANES), lambda i: (i, 0)),
        ],
        out_specs=pl.BlockSpec((br, LANES), lambda i: (i, 0)),
        compiler_params=pltpu.CompilerParams(
            dimension_semantics=("parallel",),  # shard batch over v7x's 2 TCs
        ),
    )(params, y2d)

    # Drop lane padding and restore the module's (B, 1) output shape.
    return out2d.reshape(-1)[:B].reshape(B, 1)


# TODO(synk): if this is driven by an ODE integrator, fuse the full RK step
# (multiple vector-field evaluations) into one pallas_call, keeping y resident
# in the (rows,128) layout so the pad/reshape/slice wrapper passes and launch
# overhead disappear and the packed parameters stay on-chip across evaluations.


def reference(y, w1, b1, w2, b2):
    h = jnp.tanh(y.astype(jnp.float32) @ w1 + b1)
    return (h @ w2 + b2).astype(y.dtype)


if __name__ == "__main__":
    key = jax.random.PRNGKey(0)
    k_y, k_w1, k_b1, k_w2, k_b2, k_y2, k_y3 = jax.random.split(key, 7)

    # Parameters (shapes from nn.Linear(1,16) / nn.Linear(16,1), stored (in, out)).
    w1 = jax.random.normal(k_w1, (1, HIDDEN), dtype=jnp.float32) * 0.5
    b1 = jax.random.normal(k_b1, (1, HIDDEN), dtype=jnp.float32) * 0.1
    w2 = jax.random.normal(k_w2, (HIDDEN, 1), dtype=jnp.float32) * 0.5
    b2 = jax.random.normal(k_b2, (1, 1), dtype=jnp.float32) * 0.1

    t = jnp.float32(0.0)  # unused by the module's forward

    # Small batch (single tiny full-extent block).
    B = 8
    y = jax.random.normal(k_y, (B, 1), dtype=jnp.float32)
    out = jax.block_until_ready(vector_field(t, y, w1, b1, w2, b2))
    assert out.shape == (B, 1)
    assert jnp.allclose(out, reference(y, w1, b1, w2, b2), atol=1e-5, rtol=1e-5), \
        "Pallas output mismatch (small batch)"

    # Mid-size, non-128-aligned batch (lane padding + capped blocks -> 2 grid steps).
    B2 = 2500
    y_big = jax.random.normal(k_y2, (B2, 1), dtype=jnp.float32)
    out_big = jax.block_until_ready(vector_field(t, y_big, w1, b1, w2, b2))
    assert out_big.shape == (B2, 1)
    assert jnp.allclose(out_big, reference(y_big, w1, b1, w2, b2), atol=1e-5, rtol=1e-5), \
        "Pallas output mismatch (mid batch)"

    # Larger batch (full 512-row blocks + masked ragged last block).
    B3 = 140000
    y_huge = jax.random.normal(k_y3, (B3, 1), dtype=jnp.float32)
    out_huge = jax.block_until_ready(vector_field(t, y_huge, w1, b1, w2, b2))
    assert out_huge.shape == (B3, 1)
    assert jnp.allclose(out_huge, reference(y_huge, w1, b1, w2, b2), atol=1e-5, rtol=1e-5), \
        "Pallas output mismatch (large batch)"

    print("KERNEL_OK")
</pallas_src>

<mosaic_0001>
module attributes {stable_mosaic.version = 11 : i64} {
  func.func @_vector_field_kernel(%arg0: i32, %arg1: memref<49xf32, #tpu.memory_space<smem>>, %arg2: memref<1x128xf32, #tpu.memory_space<vmem>>, %arg3: memref<1x128xf32, #tpu.memory_space<vmem>>) attributes {dimension_semantics = [#tpu.dimension_semantics<parallel>], iteration_bounds = array<i64: 1>, scalar_prefetch = 0 : i64, scratch_operands = 0 : i64, tpu.core_type = #tpu.core_type<tc>, window_params = [{transform_indices = @transform_0, window_bounds = array<i64: 49>}, {transform_indices = @transform_1, window_bounds = array<i64: 1, 128>}, {transform_indices = @transform_2, window_bounds = array<i64: 1, 128>}]} {
    %c0 = arith.constant 0 : index
    %c0_0 = arith.constant 0 : index
    %0 = vector.load %arg2[%c0, %c0_0] : memref<1x128xf32, #tpu.memory_space<vmem>>, vector<1x128xf32>
    %c0_1 = arith.constant 0 : index
    %1 = memref.load %arg1[%c0_1] : memref<49xf32, #tpu.memory_space<smem>>
    %c1 = arith.constant 1 : index
    %2 = memref.load %arg1[%c1] : memref<49xf32, #tpu.memory_space<smem>>
    %c2 = arith.constant 2 : index
    %3 = memref.load %arg1[%c2] : memref<49xf32, #tpu.memory_space<smem>>
    %c3 = arith.constant 3 : index
    %4 = memref.load %arg1[%c3] : memref<49xf32, #tpu.memory_space<smem>>
    %c4 = arith.constant 4 : index
    %5 = memref.load %arg1[%c4] : memref<49xf32, #tpu.memory_space<smem>>
    %c5 = arith.constant 5 : index
    %6 = memref.load %arg1[%c5] : memref<49xf32, #tpu.memory_space<smem>>
    %c6 = arith.constant 6 : index
    %7 = memref.load %arg1[%c6] : memref<49xf32, #tpu.memory_space<smem>>
    %c7 = arith.constant 7 : index
    %8 = memref.load %arg1[%c7] : memref<49xf32, #tpu.memory_space<smem>>
    %c8 = arith.constant 8 : index
    %9 = memref.load %arg1[%c8] : memref<49xf32, #tpu.memory_space<smem>>
    %c9 = arith.constant 9 : index
    %10 = memref.load %arg1[%c9] : memref<49xf32, #tpu.memory_space<smem>>
    %c10 = arith.constant 10 : index
    %11 = memref.load %arg1[%c10] : memref<49xf32, #tpu.memory_space<smem>>
    %c11 = arith.constant 11 : index
    %12 = memref.load %arg1[%c11] : memref<49xf32, #tpu.memory_space<smem>>
    %c12 = arith.constant 12 : index
    %13 = memref.load %arg1[%c12] : memref<49xf32, #tpu.memory_space<smem>>
    %c13 = arith.constant 13 : index
    %14 = memref.load %arg1[%c13] : memref<49xf32, #tpu.memory_space<smem>>
    %c14 = arith.constant 14 : index
    %15 = memref.load %arg1[%c14] : memref<49xf32, #tpu.memory_space<smem>>
    %c15 = arith.constant 15 : index
    %16 = memref.load %arg1[%c15] : memref<49xf32, #tpu.memory_space<smem>>
    %c16 = arith.constant 16 : index
    %17 = memref.load %arg1[%c16] : memref<49xf32, #tpu.memory_space<smem>>
    %c17 = arith.constant 17 : index
    %18 = memref.load %arg1[%c17] : memref<49xf32, #tpu.memory_space<smem>>
    %c18 = arith.constant 18 : index
    %19 = memref.load %arg1[%c18] : memref<49xf32, #tpu.memory_space<smem>>
    %c19 = arith.constant 19 : index
    %20 = memref.load %arg1[%c19] : memref<49xf32, #tpu.memory_space<smem>>
    %c20 = arith.constant 20 : index
    %21 = memref.load %arg1[%c20] : memref<49xf32, #tpu.memory_space<smem>>
    %c21 = arith.constant 21 : index
    %22 = memref.load %arg1[%c21] : memref<49xf32, #tpu.memory_space<smem>>
    %c22 = arith.constant 22 : index
    %23 = memref.load %arg1[%c22] : memref<49xf32, #tpu.memory_space<smem>>
    %c23 = arith.constant 23 : index
    %24 = memref.load %arg1[%c23] : memref<49xf32, #tpu.memory_space<smem>>
    %c24 = arith.constant 24 : index
    %25 = memref.load %arg1[%c24] : memref<49xf32, #tpu.memory_space<smem>>
    %c25 = arith.constant 25 : index
    %26 = memref.load %arg1[%c25] : memref<49xf32, #tpu.memory_space<smem>>
    %c26 = arith.constant 26 : index
    %27 = memref.load %arg1[%c26] : memref<49xf32, #tpu.memory_space<smem>>
    %c27 = arith.constant 27 : index
    %28 = memref.load %arg1[%c27] : memref<49xf32, #tpu.memory_space<smem>>
    %c28 = arith.constant 28 : index
    %29 = memref.load %arg1[%c28] : memref<49xf32, #tpu.memory_space<smem>>
    %c29 = arith.constant 29 : index
    %30 = memref.load %arg1[%c29] : memref<49xf32, #tpu.memory_space<smem>>
    %c30 = arith.constant 30 : index
    %31 = memref.load %arg1[%c30] : memref<49xf32, #tpu.memory_space<smem>>
    %c31 = arith.constant 31 : index
    %32 = memref.load %arg1[%c31] : memref<49xf32, #tpu.memory_space<smem>>
    %c32 = arith.constant 32 : index
    %33 = memref.load %arg1[%c32] : memref<49xf32, #tpu.memory_space<smem>>
    %c33 = arith.constant 33 : index
    %34 = memref.load %arg1[%c33] : memref<49xf32, #tpu.memory_space<smem>>
    %c34 = arith.constant 34 : index
    %35 = memref.load %arg1[%c34] : memref<49xf32, #tpu.memory_space<smem>>
    %c35 = arith.constant 35 : index
    %36 = memref.load %arg1[%c35] : memref<49xf32, #tpu.memory_space<smem>>
    %c36 = arith.constant 36 : index
    %37 = memref.load %arg1[%c36] : memref<49xf32, #tpu.memory_space<smem>>
    %c37 = arith.constant 37 : index
    %38 = memref.load %arg1[%c37] : memref<49xf32, #tpu.memory_space<smem>>
    %c38 = arith.constant 38 : index
    %39 = memref.load %arg1[%c38] : memref<49xf32, #tpu.memory_space<smem>>
    %c39 = arith.constant 39 : index
    %40 = memref.load %arg1[%c39] : memref<49xf32, #tpu.memory_space<smem>>
    %c40 = arith.constant 40 : index
    %41 = memref.load %arg1[%c40] : memref<49xf32, #tpu.memory_space<smem>>
    %c41 = arith.constant 41 : index
    %42 = memref.load %arg1[%c41] : memref<49xf32, #tpu.memory_space<smem>>
    %c42 = arith.constant 42 : index
    %43 = memref.load %arg1[%c42] : memref<49xf32, #tpu.memory_space<smem>>
    %c43 = arith.constant 43 : index
    %44 = memref.load %arg1[%c43] : memref<49xf32, #tpu.memory_space<smem>>
    %c44 = arith.constant 44 : index
    %45 = memref.load %arg1[%c44] : memref<49xf32, #tpu.memory_space<smem>>
    %c45 = arith.constant 45 : index
    %46 = memref.load %arg1[%c45] : memref<49xf32, #tpu.memory_space<smem>>
    %c46 = arith.constant 46 : index
    %47 = memref.load %arg1[%c46] : memref<49xf32, #tpu.memory_space<smem>>
    %c47 = arith.constant 47 : index
    %48 = memref.load %arg1[%c47] : memref<49xf32, #tpu.memory_space<smem>>
    %c48 = arith.constant 48 : index
    %49 = memref.load %arg1[%c48] : memref<49xf32, #tpu.memory_space<smem>>
    %50 = vector.broadcast %49 : f32 to vector<1x128xf32>
    %51 = vector.broadcast %1 : f32 to vector<1x128xf32>
    %52 = arith.mulf %0, %51 : vector<1x128xf32>
    %53 = vector.broadcast %17 : f32 to vector<1x128xf32>
    %54 = arith.addf %52, %53 : vector<1x128xf32>
    %55 = math.tanh %54 : vector<1x128xf32>
    %56 = vector.broadcast %33 : f32 to vector<1x128xf32>
    %57 = arith.mulf %55, %56 : vector<1x128xf32>
    %58 = arith.addf %50, %57 : vector<1x128xf32>
    %59 = vector.broadcast %2 : f32 to vector<1x128xf32>
    %60 = arith.mulf %0, %59 : vector<1x128xf32>
    %61 = vector.broadcast %18 : f32 to vector<1x128xf32>
    %62 = arith.addf %60, %61 : vector<1x128xf32>
    %63 = math.tanh %62 : vector<1x128xf32>
    %64 = vector.broadcast %34 : f32 to vector<1x128xf32>
    %65 = arith.mulf %63, %64 : vector<1x128xf32>
    %66 = arith.addf %58, %65 : vector<1x128xf32>
    %67 = vector.broadcast %3 : f32 to vector<1x128xf32>
    %68 = arith.mulf %0, %67 : vector<1x128xf32>
    %69 = vector.broadcast %19 : f32 to vector<1x128xf32>
    %70 = arith.addf %68, %69 : vector<1x128xf32>
    %71 = math.tanh %70 : vector<1x128xf32>
    %72 = vector.broadcast %35 : f32 to vector<1x128xf32>
    %73 = arith.mulf %71, %72 : vector<1x128xf32>
    %74 = arith.addf %66, %73 : vector<1x128xf32>
    %75 = vector.broadcast %4 : f32 to vector<1x128xf32>
    %76 = arith.mulf %0, %75 : vector<1x128xf32>
    %77 = vector.broadcast %20 : f32 to vector<1x128xf32>
    %78 = arith.addf %76, %77 : vector<1x128xf32>
    %79 = math.tanh %78 : vector<1x128xf32>
    %80 = vector.broadcast %36 : f32 to vector<1x128xf32>
    %81 = arith.mulf %79, %80 : vector<1x128xf32>
    %82 = arith.addf %74, %81 : vector<1x128xf32>
    %83 = vector.broadcast %5 : f32 to vector<1x128xf32>
    %84 = arith.mulf %0, %83 : vector<1x128xf32>
    %85 = vector.broadcast %21 : f32 to vector<1x128xf32>
    %86 = arith.addf %84, %85 : vector<1x128xf32>
    %87 = math.tanh %86 : vector<1x128xf32>
    %88 = vector.broadcast %37 : f32 to vector<1x128xf32>
    %89 = arith.mulf %87, %88 : vector<1x128xf32>
    %90 = arith.addf %82, %89 : vector<1x128xf32>
    %91 = vector.broadcast %6 : f32 to vector<1x128xf32>
    %92 = arith.mulf %0, %91 : vector<1x128xf32>
    %93 = vector.broadcast %22 : f32 to vector<1x128xf32>
    %94 = arith.addf %92, %93 : vector<1x128xf32>
    %95 = math.tanh %94 : vector<1x128xf32>
    %96 = vector.broadcast %38 : f32 to vector<1x128xf32>
    %97 = arith.mulf %95, %96 : vector<1x128xf32>
    %98 = arith.addf %90, %97 : vector<1x128xf32>
    %99 = vector.broadcast %7 : f32 to vector<1x128xf32>
    %100 = arith.mulf %0, %99 : vector<1x128xf32>
    %101 = vector.broadcast %23 : f32 to vector<1x128xf32>
    %102 = arith.addf %100, %101 : vector<1x128xf32>
    %103 = math.tanh %102 : vector<1x128xf32>
    %104 = vector.broadcast %39 : f32 to vector<1x128xf32>
    %105 = arith.mulf %103, %104 : vector<1x128xf32>
    %106 = arith.addf %98, %105 : vector<1x128xf32>
    %107 = vector.broadcast %8 : f32 to vector<1x128xf32>
    %108 = arith.mulf %0, %107 : vector<1x128xf32>
    %109 = vector.broadcast %24 : f32 to vector<1x128xf32>
    %110 = arith.addf %108, %109 : vector<1x128xf32>
    %111 = math.tanh %110 : vector<1x128xf32>
    %112 = vector.broadcast %40 : f32 to vector<1x128xf32>
    %113 = arith.mulf %111, %112 : vector<1x128xf32>
    %114 = arith.addf %106, %113 : vector<1x128xf32>
    %115 = vector.broadcast %9 : f32 to vector<1x128xf32>
    %116 = arith.mulf %0, %115 : vector<1x128xf32>
    %117 = vector.broadcast %25 : f32 to vector<1x128xf32>
    %118 = arith.addf %116, %117 : vector<1x128xf32>
    %119 = math.tanh %118 : vector<1x128xf32>
    %120 = vector.broadcast %41 : f32 to vector<1x128xf32>
    %121 = arith.mulf %119, %120 : vector<1x128xf32>
    %122 = arith.addf %114, %121 : vector<1x128xf32>
    %123 = vector.broadcast %10 : f32 to vector<1x128xf32>
    %124 = arith.mulf %0, %123 : vector<1x128xf32>
    %125 = vector.broadcast %26 : f32 to vector<1x128xf32>
    %126 = arith.addf %124, %125 : vector<1x128xf32>
    %127 = math.tanh %126 : vector<1x128xf32>
    %128 = vector.broadcast %42 : f32 to vector<1x128xf32>
    %129 = arith.mulf %127, %128 : vector<1x128xf32>
    %130 = arith.addf %122, %129 : vector<1x128xf32>
    %131 = vector.broadcast %11 : f32 to vector<1x128xf32>
    %132 = arith.mulf %0, %131 : vector<1x128xf32>
    %133 = vector.broadcast %27 : f32 to vector<1x128xf32>
    %134 = arith.addf %132, %133 : vector<1x128xf32>
    %135 = math.tanh %134 : vector<1x128xf32>
    %136 = vector.broadcast %43 : f32 to vector<1x128xf32>
    %137 = arith.mulf %135, %136 : vector<1x128xf32>
    %138 = arith.addf %130, %137 : vector<1x128xf32>
    %139 = vector.broadcast %12 : f32 to vector<1x128xf32>
    %140 = arith.mulf %0, %139 : vector<1x128xf32>
    %141 = vector.broadcast %28 : f32 to vector<1x128xf32>
    %142 = arith.addf %140, %141 : vector<1x128xf32>
    %143 = math.tanh %142 : vector<1x128xf32>
    %144 = vector.broadcast %44 : f32 to vector<1x128xf32>
    %145 = arith.mulf %143, %144 : vector<1x128xf32>
    %146 = arith.addf %138, %145 : vector<1x128xf32>
    %147 = vector.broadcast %13 : f32 to vector<1x128xf32>
    %148 = arith.mulf %0, %147 : vector<1x128xf32>
    %149 = vector.broadcast %29 : f32 to vector<1x128xf32>
    %150 = arith.addf %148, %149 : vector<1x128xf32>
    %151 = math.tanh %150 : vector<1x128xf32>
    %152 = vector.broadcast %45 : f32 to vector<1x128xf32>
    %153 = arith.mulf %151, %152 : vector<1x128xf32>
    %154 = arith.addf %146, %153 : vector<1x128xf32>
    %155 = vector.broadcast %14 : f32 to vector<1x128xf32>
    %156 = arith.mulf %0, %155 : vector<1x128xf32>
    %157 = vector.broadcast %30 : f32 to vector<1x128xf32>
    %158 = arith.addf %156, %157 : vector<1x128xf32>
    %159 = math.tanh %158 : vector<1x128xf32>
    %160 = vector.broadcast %46 : f32 to vector<1x128xf32>
    %161 = arith.mulf %159, %160 : vector<1x128xf32>
    %162 = arith.addf %154, %161 : vector<1x128xf32>
    %163 = vector.broadcast %15 : f32 to vector<1x128xf32>
    %164 = arith.mulf %0, %163 : vector<1x128xf32>
    %165 = vector.broadcast %31 : f32 to vector<1x128xf32>
    %166 = arith.addf %164, %165 : vector<1x128xf32>
    %167 = math.tanh %166 : vector<1x128xf32>
    %168 = vector.broadcast %47 : f32 to vector<1x128xf32>
    %169 = arith.mulf %167, %168 : vector<1x128xf32>
    %170 = arith.addf %162, %169 : vector<1x128xf32>
    %171 = vector.broadcast %16 : f32 to vector<1x128xf32>
    %172 = arith.mulf %0, %171 : vector<1x128xf32>
    %173 = vector.broadcast %32 : f32 to vector<1x128xf32>
    %174 = arith.addf %172, %173 : vector<1x128xf32>
    %175 = math.tanh %174 : vector<1x128xf32>
    %176 = vector.broadcast %48 : f32 to vector<1x128xf32>
    %177 = arith.mulf %175, %176 : vector<1x128xf32>
    %178 = arith.addf %170, %177 : vector<1x128xf32>
    %c0_2 = arith.constant 0 : index
    %c0_3 = arith.constant 0 : index
    %179 = vector.load %arg3[%c0_2, %c0_3] : memref<1x128xf32, #tpu.memory_space<vmem>>, vector<1x128xf32>
    tpu.vector_store %arg3[%c0_2, %c0_3], %178 {strides = array<i32>} : memref<1x128xf32, #tpu.memory_space<vmem>>, vector<1x128xf32>,
    return
  }
  func.func @transform_0(%arg0: i32) -> i32 {
    %c0_i32 = arith.constant 0 : i32
    %c0_i32_0 = arith.constant 0 : i32
    return %c0_i32 : i32
  }
  func.func @transform_1(%arg0: i32) -> (i32, i32) {
    %c0_i32 = arith.constant 0 : i32
    %c0_i32_0 = arith.constant 0 : i32
    return %arg0, %c0_i32 : i32, i32
  }
  func.func @transform_2(%arg0: i32) -> (i32, i32) {
    %c0_i32 = arith.constant 0 : i32
    %c0_i32_0 = arith.constant 0 : i32
    return %arg0, %c0_i32 : i32, i32
  }
}

</mosaic_0001>

<llo_original>
// kernel: tpu_custom_call.1
$region0: #{tpu_custom_call.1}
  #allocation0 [shape = 'u32[]', space=smem, size = 0x4, offset = 0x4, fixed_abs, tag = 'smem constant byte address 0x4 - core index']
  #allocation1 [shape = 'u32[144,128]{1,0:T(1,128)}', space=vmem, size = 0x12000, scoped, tag = 'internal scratch']
  %s0 = inlined_call_operand.hbm [shape: f32[49], index: 0, kind: input, shape index: {}]
  %s1 = inlined_call_operand.vmem [shape: f32[1,128], index: 1, kind: input, shape index: {}]
  %s2 = inlined_call_operand.hbm [shape: f32[1,128], index: 2, kind: output, shape index: {}]
  %s3 = sld [smem:[#allocation0]]
  $region22: #{tpu_custom_call.1} parent=0
    _
  %s5 = ssub.s32 1, %s3
  %s6 = scalar_select 0, %s5, %s3
  $region1: #{tpu_custom_call.1} parent=0
    #allocation2 [shape = 'u8[512]{0}', space=smem, size = 0x200, scoped, tag = 'input window, operand 0, single buffered']
    #allocation3 [shape = 's32[1]{0}', space=sflag, size = 0x4, scoped, tag = 'scoped memory for tpu_custom_call.1']
    #allocation4 [shape = 's32[1]{0}', space=sflag, size = 0x4, scoped, tag = 'scoped memory for tpu_custom_call.1']
    #allocation5 [shape = 'u8[512]{0}', space=vmem, size = 0x400, scoped, tag = 'output window, operand 0, single buffered']
    %7 = vsyncpa [#allocation4], 0
    %8 = vsyncpa [#allocation3], 0
    // Predicated region
    $region2: #{tpu_custom_call.1} parent=1 // pred_check
      _
    $region3: #{tpu_custom_call.1} parent=1 // pred_check_branch
      %10 = sbr.rel (0) target = $region5
    $region4: #{tpu_custom_call.1} parent=1 // pred_region
      %s12 = ssub.s32 16, 16
      %13 = vsyncadd [#allocation4], %s12
      %16 = dma.hbm_to_smem %s0, 16, [#allocation2], [#allocation4]
    $region5: #{tpu_custom_call.1} parent=1 // pred_fallthru
      _
    // Predicated region
    $region6: #{tpu_custom_call.1} parent=1 // pred_check
      _
    $region7: #{tpu_custom_call.1} parent=1 // pred_check_branch
      %18 = sbr.rel (0) target = $region9
    $region8: #{tpu_custom_call.1} parent=1 // pred_region
      _
    $region9: #{tpu_custom_call.1} parent=1 // pred_fallthru
      _
    // Predicated region
    $region10: #{tpu_custom_call.1} parent=1 // pred_check
      _
    $region11: #{tpu_custom_call.1} parent=1 // pred_check_branch
      %20 = sbr.rel (0) target = $region13
    $region12: #{tpu_custom_call.1} parent=1 // pred_region
      %21 = dma.done [#allocation4], 16
    $region13: #{tpu_custom_call.1} parent=1 // pred_fallthru
      _
    %22 = sfence
    %v23 = vld [vmem:[%s1] sm:$0x1]
    %s24 = sld [smem:[#allocation2]]
    %s25 = sld [smem:[#allocation2 + $0x1]]
    %s26 = sld [smem:[#allocation2 + $0x2]]
    %s27 = sld [smem:[#allocation2 + $0x3]]
    %s28 = sld [smem:[#allocation2 + $0x4]]
    %s29 = sld [smem:[#allocation2 + $0x5]]
    %s30 = sld [smem:[#allocation2 + $0x6]]
    %s31 = sld [smem:[#allocation2 + $0x7]]
    %s32 = sld [smem:[#allocation2 + $0x8]]
    %s33 = sld [smem:[#allocation2 + $0x9]]
    %s34 = sld [smem:[#allocation2 + $0xa]]
    %s35 = sld [smem:[#allocation2 + $0xb]]
    %s36 = sld [smem:[#allocation2 + $0xc]]
    %s37 = sld [smem:[#allocation2 + $0xd]]
    %s38 = sld [smem:[#allocation2 + $0xe]]
    %s39 = sld [smem:[#allocation2 + $0xf]]
    %s40 = sld [smem:[#allocation2 + $0x10]]
    %s41 = sld [smem:[#allocation2 + $0x11]]
    %s42 = sld [smem:[#allocation2 + $0x12]]
    %s43 = sld [smem:[#allocation2 + $0x13]]
    %s44 = sld [smem:[#allocation2 + $0x14]]
    %s45 = sld [smem:[#allocation2 + $0x15]]
    %s46 = sld [smem:[#allocation2 + $0x16]]
    %s47 = sld [smem:[#allocation2 + $0x17]]
    %s48 = sld [smem:[#allocation2 + $0x18]]
    %s49 = sld [smem:[#allocation2 + $0x19]]
    %s50 = sld [smem:[#allocation2 + $0x1a]]
    %s51 = sld [smem:[#allocation2 + $0x1b]]
    %s52 = sld [smem:[#allocation2 + $0x1c]]
    %s53 = sld [smem:[#allocation2 + $0x1d]]
    %s54 = sld [smem:[#allocation2 + $0x1e]]
    %s55 = sld [smem:[#allocation2 + $0x1f]]
    %s56 = sld [smem:[#allocation2 + $0x20]]
    %s57 = sld [smem:[#allocation2 + $0x21]]
    %s58 = sld [smem:[#allocation2 + $0x22]]
    %s59 = sld [smem:[#allocation2 + $0x23]]
    %s60 = sld [smem:[#allocation2 + $0x24]]
    %s61 = sld [smem:[#allocation2 + $0x25]]
    %s62 = sld [smem:[#allocation2 + $0x26]]
    %s63 = sld [smem:[#allocation2 + $0x27]]
    %s64 = sld [smem:[#allocation2 + $0x28]]
    %s65 = sld [smem:[#allocation2 + $0x29]]
    %s66 = sld [smem:[#allocation2 + $0x2a]]
    %s67 = sld [smem:[#allocation2 + $0x2b]]
    %s68 = sld [smem:[#allocation2 + $0x2c]]
    %s69 = sld [smem:[#allocation2 + $0x2d]]
    %s70 = sld [smem:[#allocation2 + $0x2e]]
    %s71 = sld [smem:[#allocation2 + $0x2f]]
    %s72 = sld [smem:[#allocation2 + $0x30]]
    %v73 = vstv %s72
    %v74 = vstv %s24
    %v75 = vmul.f32 %v23, %v74
    %v76 = vstv %s40
    %v77 = vadd.f32 %v75, %v76
    %v78 = vtanh.pop %v77
    %v79 = vstv %s56
    %v80 = vmul.f32 %v78, %v79
    %v81 = vadd.f32 %v73, %v80
    %v82 = vstv %s25
    %v83 = vmul.f32 %v23, %v82
    %v84 = vstv %s41
    %v85 = vadd.f32 %v83, %v84
    %v86 = vtanh.pop %v85
    %v87 = vstv %s57
    %v88 = vmul.f32 %v86, %v87
    %v89 = vadd.f32 %v81, %v88
    %v90 = vstv %s26
    %v91 = vmul.f32 %v23, %v90
    %v92 = vstv %s42
    %v93 = vadd.f32 %v91, %v92
    %v94 = vtanh.pop %v93
    %v95 = vstv %s58
    %v96 = vmul.f32 %v94, %v95
    %v97 = vadd.f32 %v89, %v96
    %v98 = vstv %s27
    %v99 = vmul.f32 %v23, %v98
    %v100 = vstv %s43
    %v101 = vadd.f32 %v99, %v100
    %v102 = vtanh.pop %v101
    %v103 = vstv %s59
    %v104 = vmul.f32 %v102, %v103
    %v105 = vadd.f32 %v97, %v104
    %v106 = vstv %s28
    %v107 = vmul.f32 %v23, %v106
    %v108 = vstv %s44
    %v109 = vadd.f32 %v107, %v108
    %v110 = vtanh.pop %v109
    %v111 = vstv %s60
    %v112 = vmul.f32 %v110, %v111
    %v113 = vadd.f32 %v105, %v112
    %v114 = vstv %s29
    %v115 = vmul.f32 %v23, %v114
    %v116 = vstv %s45
    %v117 = vadd.f32 %v115, %v116
    %v118 = vtanh.pop %v117
    %v119 = vstv %s61
    %v120 = vmul.f32 %v118, %v119
    %v121 = vadd.f32 %v113, %v120
    %v122 = vstv %s30
    %v123 = vmul.f32 %v23, %v122
    %v124 = vstv %s46
    %v125 = vadd.f32 %v123, %v124
    %v126 = vtanh.pop %v125
    %v127 = vstv %s62
    %v128 = vmul.f32 %v126, %v127
    %v129 = vadd.f32 %v121, %v128
    %v130 = vstv %s31
    %v131 = vmul.f32 %v23, %v130
    %v132 = vstv %s47
    %v133 = vadd.f32 %v131, %v132
    %v134 = vtanh.pop %v133
    %v135 = vstv %s63
    %v136 = vmul.f32 %v134, %v135
    %v137 = vadd.f32 %v129, %v136
    %v138 = vstv %s32
    %v139 = vmul.f32 %v23, %v138
    %v140 = vstv %s48
    %v141 = vadd.f32 %v139, %v140
    %v142 = vtanh.pop %v141
    %v143 = vstv %s64
    %v144 = vmul.f32 %v142, %v143
    %v145 = vadd.f32 %v137, %v144
    %v146 = vstv %s33
    %v147 = vmul.f32 %v23, %v146
    %v148 = vstv %s49
    %v149 = vadd.f32 %v147, %v148
    %v150 = vtanh.pop %v149
    %v151 = vstv %s65
    %v152 = vmul.f32 %v150, %v151
    %v153 = vadd.f32 %v145, %v152
    %v154 = vstv %s34
    %v155 = vmul.f32 %v23, %v154
    %v156 = vstv %s50
    %v157 = vadd.f32 %v155, %v156
    %v158 = vtanh.pop %v157
    %v159 = vstv %s66
    %v160 = vmul.f32 %v158, %v159
    %v161 = vadd.f32 %v153, %v160
    %v162 = vstv %s35
    %v163 = vmul.f32 %v23, %v162
    %v164 = vstv %s51
    %v165 = vadd.f32 %v163, %v164
    %v166 = vtanh.pop %v165
    %v167 = vstv %s67
    %v168 = vmul.f32 %v166, %v167
    %v169 = vadd.f32 %v161, %v168
    %v170 = vstv %s36
    %v171 = vmul.f32 %v23, %v170
    %v172 = vstv %s52
    %v173 = vadd.f32 %v171, %v172
    %v174 = vtanh.pop %v173
    %v175 = vstv %s68
    %v176 = vmul.f32 %v174, %v175
    %v177 = vadd.f32 %v169, %v176
    %v178 = vstv %s37
    %v179 = vmul.f32 %v23, %v178
    %v180 = vstv %s53
    %v181 = vadd.f32 %v179, %v180
    %v182 = vtanh.pop %v181
    %v183 = vstv %s69
    %v184 = vmul.f32 %v182, %v183
    %v185 = vadd.f32 %v177, %v184
    %v186 = vstv %s38
    %v187 = vmul.f32 %v23, %v186
    %v188 = vstv %s54
    %v189 = vadd.f32 %v187, %v188
    %v190 = vtanh.pop %v189
    %v191 = vstv %s70
    %v192 = vmul.f32 %v190, %v191
    %v193 = vadd.f32 %v185, %v192
    %v194 = vstv %s39
    %v195 = vmul.f32 %v23, %v194
    %v196 = vstv %s55
    %v197 = vadd.f32 %v195, %v196
    %v198 = vtanh.pop %v197
    %v199 = vstv %s71
    %v200 = vmul.f32 %v198, %v199
    %v201 = vadd.f32 %v193, %v200
    %202 = vst [vmem:[#allocation5] sm:$0x1] %v201
    // Predicated region
    $region14: #{tpu_custom_call.1} parent=1 // pred_check
      _
    $region15: #{tpu_custom_call.1} parent=1 // pred_check_branch
      %204 = sbr.rel (0) target = $region17
    $region16: #{tpu_custom_call.1} parent=1 // pred_region
      %s206 = ssub.s32 16, 16
      %207 = vsyncadd [#allocation3], %s206
      %s209 = sshll.u32 [#allocation5], 4
      %s210 = int_to_ptr.vmem [resolvable:$true] %s209
      %212 = dma.vmem_to_hbm [thread:$0]  %s210, 16, %s2, [#allocation3]
    $region17: #{tpu_custom_call.1} parent=1 // pred_fallthru
      _
    // Predicated region
    $region18: #{tpu_custom_call.1} parent=1 // pred_check
      _
    $region19: #{tpu_custom_call.1} parent=1 // pred_check_branch
      %214 = sbr.rel (0) target = $region21
    $region20: #{tpu_custom_call.1} parent=1 // pred_region
      %215 = dma.done [#allocation3], 16
    $region21: #{tpu_custom_call.1} parent=1 // pred_fallthru
      _
    %216 = vsyncpa [#allocation3], 1
    %217 = vsyncpa [#allocation4], 1

</llo_original>
